<compile_context>
chip_gen: v5e
topology: v5e:2x2
jax: 0.10.0
libtpu: 0.0.40
codegen_flags: <defaults>
</compile_context>

<pallas_src>
import jax
import jax.numpy as jnp
from jax import lax
from jax.experimental import pallas as pl
from jax.experimental.pallas import tpu as pltpu


def _round_up(x, m):
    return ((x + m - 1) // m) * m


# ----------------------------------------------------------------------------
# Kernel: one batch tile, all weights resident in VMEM.
# ----------------------------------------------------------------------------
def critic_kernel(obs_acts_ref, laser_ref,
                  wpre_ref, bpre_ref,
                  w1oa_ref, w1p_ref, b1_ref,
                  w2_ref, b2_ref,
                  w3_row_ref, b3_ref,
                  out_ref):
    f32 = jnp.float32

    # PreFC + relu (MXU matmul with f32 accumulate; bias/relu on the VPU in f32)
    pre = jnp.dot(laser_ref[...], wpre_ref[...],
                  preferred_element_type=f32) + bpre_ref[...]
    pre = jnp.maximum(pre, 0.0)

    # FC1 over the virtual concat [obs|acts , pre] -> two MXU matmuls
    h1 = (jnp.dot(obs_acts_ref[...], w1oa_ref[...], preferred_element_type=f32)
          + jnp.dot(pre.astype(w1p_ref.dtype), w1p_ref[...],
                    preferred_element_type=f32)
          + b1_ref[...])
    h1 = jnp.maximum(h1, 0.0)

    # FC2 + relu
    h2 = jnp.dot(h1.astype(w2_ref.dtype), w2_ref[...],
                 preferred_element_type=f32) + b2_ref[...]
    h2 = jnp.maximum(h2, 0.0)

    # FC3 (out_features == 1): w3_row @ h2^T on the MXU -> lane-dense (1, tb)
    # row (unmasked vst), instead of a (tb, 1) column of masked partial stores.
    out_row = lax.dot_general(
        w3_row_ref[...], h2,
        dimension_numbers=(((1,), (1,)), ((), ())),
        preferred_element_type=f32) + b3_ref[...]
    out_ref[...] = out_row[None].astype(out_ref.dtype)     # (1, 1, tb)


# ----------------------------------------------------------------------------
# One-time parameter preprocessing (call once at load time, NOT per forward).
# ----------------------------------------------------------------------------
def prepare_params(params, obs_dim, compute_dtype=jnp.float32):
    """Split FC1's weight into [obs|acts] and [pre] row blocks, store FC3's
    weight as a (1, hidden2) f32 row for the lane-dense MXU product, and
    optionally cast the big matmul weights to a low-precision MXU dtype.
    Biases stay f32 so the VPU bias/relu path is f32 on all chips (incl. v5e,
    which has no bf16 VPU)."""
    w1 = params["w1"]
    las_out_dim = params["wpre"].shape[1]
    w1o = w1[:obs_dim]                              # rows for obs
    w1p = w1[obs_dim:obs_dim + las_out_dim]         # rows for PreFC output
    w1a = w1[obs_dim + las_out_dim:]                # rows for acts
    w1oa = jnp.concatenate([w1o, w1a], axis=0)      # matches cat([obs, acts])
    cd = compute_dtype
    return dict(
        wpre=params["wpre"].astype(cd),
        bpre=params["bpre"].astype(jnp.float32),
        w1oa=w1oa.astype(cd),
        w1p=w1p.astype(cd),
        b1=params["b1"].astype(jnp.float32),
        w2=params["w2"].astype(cd),
        b2=params["b2"].astype(jnp.float32),
        w3_row=params["w3"].T.astype(jnp.float32),  # (1, second_hidden), tiny
        b3=params["b3"].astype(jnp.float32),
    )


# ----------------------------------------------------------------------------
# Forward wrapper: batch-tiled pallas_call with resident weights.
# ----------------------------------------------------------------------------
def critic_forward(obs, acts, laser, prepped, *, block_b=512):
    B = obs.shape[0]
    cd = prepped["wpre"].dtype

    obs_acts = jnp.concatenate([obs, acts], axis=1).astype(cd)
    laser_c = laser.astype(cd)

    oa_dim = obs_acts.shape[1]
    las_dim = laser_c.shape[1]
    las_out_dim = prepped["wpre"].shape[1]
    hidden = prepped["w1oa"].shape[1]
    hidden2 = prepped["w2"].shape[1]

    # Batch tile: multiple of 8 (sublane), capped at block_b; pad B up to a
    # multiple of the tile so every grid step sees a full block.
    block_b = _round_up(block_b, 8)
    tb = min(block_b, _round_up(B, 8))
    bp = _round_up(B, tb)
    if bp != B:
        obs_acts = jnp.pad(obs_acts, ((0, bp - B), (0, 0)))
        laser_c = jnp.pad(laser_c, ((0, bp - B), (0, 0)))
    n_tiles = bp // tb

    # Advisory cost estimate so XLA can overlap surrounding ops.
    itemsize = jnp.dtype(cd).itemsize
    flops = 2 * bp * (las_dim * las_out_dim + oa_dim * hidden
                      + las_out_dim * hidden + hidden * hidden2 + hidden2)
    weight_elems = (las_dim * las_out_dim + oa_dim * hidden
                    + las_out_dim * hidden + hidden * hidden2 + hidden2)
    bias_bytes = 4 * (las_out_dim + hidden + hidden2 + 1)
    bytes_accessed = (bp * (oa_dim + las_dim) * itemsize
                      + weight_elems * itemsize + bias_bytes
                      + bp * 1 * 4)
    cost = pl.CostEstimate(flops=flops, transcendentals=0,
                           bytes_accessed=bytes_accessed)

    const = lambda i: (0, 0)       # weights/biases: same block every step
    tile = lambda i: (i, 0)        # batch tiles walk down the batch axis

    out = pl.pallas_call(
        critic_kernel,
        out_shape=jax.ShapeDtypeStruct((n_tiles, 1, tb), jnp.float32),
        grid_spec=pltpu.PrefetchScalarGridSpec(
            num_scalar_prefetch=0,
            grid=(n_tiles,),
            in_specs=[
                pl.BlockSpec((tb, oa_dim), tile),               # obs_acts
                pl.BlockSpec((tb, las_dim), tile),              # laser
                pl.BlockSpec((las_dim, las_out_dim), const),    # wpre
                pl.BlockSpec((1, las_out_dim), const),          # bpre
                pl.BlockSpec((oa_dim, hidden), const),          # w1oa
                pl.BlockSpec((las_out_dim, hidden), const),     # w1p
                pl.BlockSpec((1, hidden), const),               # b1
                pl.BlockSpec((hidden, hidden2), const),         # w2
                pl.BlockSpec((1, hidden2), const),              # b2
                pl.BlockSpec((1, hidden2), const),              # w3_row
                pl.BlockSpec((1, 1), const),                    # b3
            ],
            out_specs=pl.BlockSpec((1, 1, tb), lambda i: (i, 0, 0)),
        ),
        compiler_params=pltpu.CompilerParams(
            dimension_semantics=("parallel",),
        ),
        cost_estimate=cost,
    )(obs_acts, laser_c,
      prepped["wpre"], prepped["bpre"],
      prepped["w1oa"], prepped["w1p"], prepped["b1"],
      prepped["w2"], prepped["b2"],
      prepped["w3_row"], prepped["b3"])

    # (n_tiles, 1, tb) lane-dense slab -> (B, 1) column (layout plumbing only).
    return out.reshape(bp, 1)[:B]


# ----------------------------------------------------------------------------
# Parameter init (PyTorch-style uniform +-1/sqrt(fan_in)) and pure-JAX ref.
# ----------------------------------------------------------------------------
def init_params(key, obs_dim, act_dim, las_dim, las_out_dim,
                hidden_dim, second_hidden_dim):
    def linear(key, fan_in, fan_out):
        kw, kb = jax.random.split(key)
        bound = 1.0 / jnp.sqrt(fan_in)
        w = jax.random.uniform(kw, (fan_in, fan_out), jnp.float32, -bound, bound)
        b = jax.random.uniform(kb, (1, fan_out), jnp.float32, -bound, bound)
        return w, b

    k0, k1, k2, k3 = jax.random.split(key, 4)
    wpre, bpre = linear(k0, las_dim, las_out_dim)
    w1, b1 = linear(k1, obs_dim + las_out_dim + act_dim, hidden_dim)
    w2, b2 = linear(k2, hidden_dim, second_hidden_dim)
    w3, b3 = linear(k3, second_hidden_dim, 1)
    return dict(wpre=wpre, bpre=bpre, w1=w1, b1=b1,
                w2=w2, b2=b2, w3=w3, b3=b3)


def critic_reference(obs, acts, laser, params):
    """Mirrors the PyTorch forward, including the explicit concat."""
    pre = jax.nn.relu(laser @ params["wpre"] + params["bpre"])
    combined = jnp.concatenate([obs, pre, acts], axis=1)
    h1 = jax.nn.relu(combined @ params["w1"] + params["b1"])
    h2 = jax.nn.relu(h1 @ params["w2"] + params["b2"])
    return h2 @ params["w3"] + params["b3"]


if __name__ == "__main__":
    # Hyperparameters consistent with Critic.__init__
    n_agent = 2
    dim_observation = 16
    dim_action = 3
    dim_laser = 32
    las_output = 10
    hidden_layer = 128
    second_hidden_layer = 64

    obs_dim = dim_observation * n_agent            # 32
    act_dim = dim_action * n_agent                 # 6
    las_dim = dim_laser * n_agent                  # 64
    las_out_dim = las_output * n_agent             # 20
    hidden_dim = hidden_layer * n_agent            # 256
    second_hidden_dim = second_hidden_layer * n_agent  # 128

    key = jax.random.PRNGKey(0)
    kp, ko, ka, kl = jax.random.split(key, 4)
    params = init_params(kp, obs_dim, act_dim, las_dim, las_out_dim,
                         hidden_dim, second_hidden_dim)

    # --- small rollout-style batch (single grid step) ---------------------
    B = 8
    obs = jax.random.normal(ko, (B, obs_dim), jnp.float32)
    acts = jax.random.normal(ka, (B, act_dim), jnp.float32)
    laser = jax.random.normal(kl, (B, las_dim), jnp.float32)

    prepped_f32 = prepare_params(params, obs_dim, compute_dtype=jnp.float32)
    out = jax.block_until_ready(critic_forward(obs, acts, laser, prepped_f32))
    ref = critic_reference(obs, acts, laser, params)
    assert out.shape == (B, 1)
    assert jnp.allclose(out, ref, atol=1e-4, rtol=1e-4)

    # --- multi-tile batch (exercises grid, padding, resident weights) -----
    B2 = 40
    ko2, ka2, kl2 = jax.random.split(jax.random.PRNGKey(1), 3)
    obs2 = jax.random.normal(ko2, (B2, obs_dim), jnp.float32)
    acts2 = jax.random.normal(ka2, (B2, act_dim), jnp.float32)
    laser2 = jax.random.normal(kl2, (B2, las_dim), jnp.float32)
    out2 = jax.block_until_ready(
        critic_forward(obs2, acts2, laser2, prepped_f32, block_b=16))
    ref2 = critic_reference(obs2, acts2, laser2, params)
    assert out2.shape == (B2, 1)
    assert jnp.allclose(out2, ref2, atol=1e-4, rtol=1e-4)

    # --- bf16 MXU-operand mode (f32 accumulate / bias / relu) --------------
    prepped_bf16 = prepare_params(params, obs_dim, compute_dtype=jnp.bfloat16)
    out_bf16 = jax.block_until_ready(
        critic_forward(obs2, acts2, laser2, prepped_bf16, block_b=16))
    assert out_bf16.shape == (B2, 1)
    assert bool(jnp.all(jnp.isfinite(out_bf16)))
    assert jnp.allclose(out_bf16, ref2, atol=1e-1, rtol=1e-1)

    print("KERNEL_OK")
</pallas_src>

<mosaic_0001>
module attributes {stable_mosaic.version = 11 : i64} {
  func.func @critic_kernel(%arg0: i32, %arg1: memref<8x38xf32, #tpu.memory_space<vmem>>, %arg2: memref<8x64xf32, #tpu.memory_space<vmem>>, %arg3: memref<64x20xf32, #tpu.memory_space<vmem>>, %arg4: memref<1x20xf32, #tpu.memory_space<vmem>>, %arg5: memref<38x256xf32, #tpu.memory_space<vmem>>, %arg6: memref<20x256xf32, #tpu.memory_space<vmem>>, %arg7: memref<1x256xf32, #tpu.memory_space<vmem>>, %arg8: memref<256x128xf32, #tpu.memory_space<vmem>>, %arg9: memref<1x128xf32, #tpu.memory_space<vmem>>, %arg10: memref<1x128xf32, #tpu.memory_space<vmem>>, %arg11: memref<1x1xf32, #tpu.memory_space<vmem>>, %arg12: memref<1x1x8xf32, #tpu.memory_space<vmem>>) attributes {dimension_semantics = [#tpu.dimension_semantics<parallel>], iteration_bounds = array<i64: 1>, scalar_prefetch = 0 : i64, scratch_operands = 0 : i64, tpu.core_type = #tpu.core_type<tc>, window_params = [{transform_indices = @transform_0, window_bounds = array<i64: 8, 38>}, {transform_indices = @transform_1, window_bounds = array<i64: 8, 64>}, {pipeline_mode = #tpu.pipeline_mode<synchronous>, transform_indices = @transform_2, window_bounds = array<i64: 64, 20>}, {pipeline_mode = #tpu.pipeline_mode<synchronous>, transform_indices = @transform_3, window_bounds = array<i64: 1, 20>}, {pipeline_mode = #tpu.pipeline_mode<synchronous>, transform_indices = @transform_4, window_bounds = array<i64: 38, 256>}, {pipeline_mode = #tpu.pipeline_mode<synchronous>, transform_indices = @transform_5, window_bounds = array<i64: 20, 256>}, {pipeline_mode = #tpu.pipeline_mode<synchronous>, transform_indices = @transform_6, window_bounds = array<i64: 1, 256>}, {pipeline_mode = #tpu.pipeline_mode<synchronous>, transform_indices = @transform_7, window_bounds = array<i64: 256, 128>}, {pipeline_mode = #tpu.pipeline_mode<synchronous>, transform_indices = @transform_8, window_bounds = array<i64: 1, 128>}, {pipeline_mode = #tpu.pipeline_mode<synchronous>, transform_indices = @transform_9, window_bounds = array<i64: 1, 128>}, {pipeline_mode = #tpu.pipeline_mode<synchronous>, transform_indices = @transform_10, window_bounds = array<i64: 1, 1>}, {transform_indices = @transform_11, window_bounds = array<i64: 1, 1, 8>}]} {
    %c0 = arith.constant 0 : index
    %c0_0 = arith.constant 0 : index
    %0 = vector.load %arg2[%c0, %c0_0] : memref<8x64xf32, #tpu.memory_space<vmem>>, vector<8x64xf32>
    %c0_1 = arith.constant 0 : index
    %c0_2 = arith.constant 0 : index
    %1 = vector.load %arg3[%c0_1, %c0_2] : memref<64x20xf32, #tpu.memory_space<vmem>>, vector<64x20xf32>
    %cst = arith.constant dense<0.000000e+00> : vector<8x20xf32>
    %2 = tpu.matmul %0, %1, %cst {dimension_numbers = #tpu.dot_dimension_numbers<[1], [0], [0], [1], [0, 0, 1, 1], [], []>} : vector<8x64xf32>, vector<64x20xf32>, vector<8x20xf32> -> vector<8x20xf32>
    %c0_3 = arith.constant 0 : index
    %c0_4 = arith.constant 0 : index
    %3 = vector.load %arg4[%c0_3, %c0_4] : memref<1x20xf32, #tpu.memory_space<vmem>>, vector<1x20xf32>
    %4 = vector.broadcast %3 : vector<1x20xf32> to vector<8x20xf32>
    %5 = arith.addf %2, %4 : vector<8x20xf32>
    %cst_5 = arith.constant 0.000000e+00 : f32
    %6 = vector.broadcast %cst_5 : f32 to vector<8x20xf32>
    %7 = arith.maximumf %5, %6 : vector<8x20xf32>
    %c0_6 = arith.constant 0 : index
    %c0_7 = arith.constant 0 : index
    %8 = vector.load %arg1[%c0_6, %c0_7] : memref<8x38xf32, #tpu.memory_space<vmem>>, vector<8x38xf32>
    %c0_8 = arith.constant 0 : index
    %c0_9 = arith.constant 0 : index
    %9 = vector.load %arg5[%c0_8, %c0_9] : memref<38x256xf32, #tpu.memory_space<vmem>>, vector<38x256xf32>
    %cst_10 = arith.constant dense<0.000000e+00> : vector<8x256xf32>
    %10 = tpu.matmul %8, %9, %cst_10 {dimension_numbers = #tpu.dot_dimension_numbers<[1], [0], [0], [1], [0, 0, 1, 1], [], []>} : vector<8x38xf32>, vector<38x256xf32>, vector<8x256xf32> -> vector<8x256xf32>
    %c0_11 = arith.constant 0 : index
    %c0_12 = arith.constant 0 : index
    %11 = vector.load %arg6[%c0_11, %c0_12] : memref<20x256xf32, #tpu.memory_space<vmem>>, vector<20x256xf32>
    %cst_13 = arith.constant dense<0.000000e+00> : vector<8x256xf32>
    %12 = tpu.matmul %7, %11, %cst_13 {dimension_numbers = #tpu.dot_dimension_numbers<[1], [0], [0], [1], [0, 0, 1, 1], [], []>} : vector<8x20xf32>, vector<20x256xf32>, vector<8x256xf32> -> vector<8x256xf32>
    %13 = arith.addf %10, %12 : vector<8x256xf32>
    %c0_14 = arith.constant 0 : index
    %c0_15 = arith.constant 0 : index
    %14 = vector.load %arg7[%c0_14, %c0_15] : memref<1x256xf32, #tpu.memory_space<vmem>>, vector<1x256xf32>
    %15 = vector.broadcast %14 : vector<1x256xf32> to vector<8x256xf32>
    %16 = arith.addf %13, %15 : vector<8x256xf32>
    %cst_16 = arith.constant 0.000000e+00 : f32
    %17 = vector.broadcast %cst_16 : f32 to vector<8x256xf32>
    %18 = arith.maximumf %16, %17 : vector<8x256xf32>
    %c0_17 = arith.constant 0 : index
    %c0_18 = arith.constant 0 : index
    %19 = vector.load %arg8[%c0_17, %c0_18] : memref<256x128xf32, #tpu.memory_space<vmem>>, vector<256x128xf32>
    %cst_19 = arith.constant dense<0.000000e+00> : vector<8x128xf32>
    %20 = tpu.matmul %18, %19, %cst_19 {dimension_numbers = #tpu.dot_dimension_numbers<[1], [0], [0], [1], [0, 0, 1, 1], [], []>} : vector<8x256xf32>, vector<256x128xf32>, vector<8x128xf32> -> vector<8x128xf32>
    %c0_20 = arith.constant 0 : index
    %c0_21 = arith.constant 0 : index
    %21 = vector.load %arg9[%c0_20, %c0_21] : memref<1x128xf32, #tpu.memory_space<vmem>>, vector<1x128xf32>
    %22 = vector.broadcast %21 : vector<1x128xf32> to vector<8x128xf32>
    %23 = arith.addf %20, %22 : vector<8x128xf32>
    %cst_22 = arith.constant 0.000000e+00 : f32
    %24 = vector.broadcast %cst_22 : f32 to vector<8x128xf32>
    %25 = arith.maximumf %23, %24 : vector<8x128xf32>
    %c0_23 = arith.constant 0 : index
    %c0_24 = arith.constant 0 : index
    %26 = vector.load %arg10[%c0_23, %c0_24] : memref<1x128xf32, #tpu.memory_space<vmem>>, vector<1x128xf32>
    %cst_25 = arith.constant dense<0.000000e+00> : vector<1x8xf32>
    %27 = tpu.matmul %26, %25, %cst_25 {dimension_numbers = #tpu.dot_dimension_numbers<[1], [1], [0], [0], [0, 0, 1, 0], [], []>} : vector<1x128xf32>, vector<8x128xf32>, vector<1x8xf32> -> vector<1x8xf32>
    %c0_26 = arith.constant 0 : index
    %c0_27 = arith.constant 0 : index
    %28 = vector.load %arg11[%c0_26, %c0_27] : memref<1x1xf32, #tpu.memory_space<vmem>>, vector<1x1xf32>
    %29 = vector.broadcast %28 : vector<1x1xf32> to vector<1x8xf32>
    %30 = arith.addf %27, %29 : vector<1x8xf32>
    %31 = vector.shape_cast %30 : vector<1x8xf32> to vector<1x1x8xf32>
    %c0_28 = arith.constant 0 : index
    %c0_29 = arith.constant 0 : index
    %c0_30 = arith.constant 0 : index
    %32 = vector.load %arg12[%c0_28, %c0_29, %c0_30] : memref<1x1x8xf32, #tpu.memory_space<vmem>>, vector<1x1x8xf32>
    tpu.vector_store %arg12[%c0_28, %c0_29, %c0_30], %31 {strides = array<i32>} : memref<1x1x8xf32, #tpu.memory_space<vmem>>, vector<1x1x8xf32>,
    return
  }
  func.func @transform_0(%arg0: i32) -> (i32, i32) {
    %c0_i32 = arith.constant 0 : i32
    %c0_i32_0 = arith.constant 0 : i32
    return %arg0, %c0_i32 : i32, i32
  }
  func.func @transform_1(%arg0: i32) -> (i32, i32) {
    %c0_i32 = arith.constant 0 : i32
    %c0_i32_0 = arith.constant 0 : i32
    return %arg0, %c0_i32 : i32, i32
  }
  func.func @transform_2(%arg0: i32) -> (i32, i32) {
    %c0_i32 = arith.constant 0 : i32
    %c0_i32_0 = arith.constant 0 : i32
    %c0_i32_1 = arith.constant 0 : i32
    return %c0_i32, %c0_i32_0 : i32, i32
  }
  func.func @transform_3(%arg0: i32) -> (i32, i32) {
    %c0_i32 = arith.constant 0 : i32
    %c0_i32_0 = arith.constant 0 : i32
    %c0_i32_1 = arith.constant 0 : i32
    return %c0_i32, %c0_i32_0 : i32, i32
  }
  func.func @transform_4(%arg0: i32) -> (i32, i32) {
    %c0_i32 = arith.constant 0 : i32
    %c0_i32_0 = arith.constant 0 : i32
    %c0_i32_1 = arith.constant 0 : i32
    return %c0_i32, %c0_i32_0 : i32, i32
  }
  func.func @transform_5(%arg0: i32) -> (i32, i32) {
    %c0_i32 = arith.constant 0 : i32
    %c0_i32_0 = arith.constant 0 : i32
    %c0_i32_1 = arith.constant 0 : i32
    return %c0_i32, %c0_i32_0 : i32, i32
  }
  func.func @transform_6(%arg0: i32) -> (i32, i32) {
    %c0_i32 = arith.constant 0 : i32
    %c0_i32_0 = arith.constant 0 : i32
    %c0_i32_1 = arith.constant 0 : i32
    return %c0_i32, %c0_i32_0 : i32, i32
  }
  func.func @transform_7(%arg0: i32) -> (i32, i32) {
    %c0_i32 = arith.constant 0 : i32
    %c0_i32_0 = arith.constant 0 : i32
    %c0_i32_1 = arith.constant 0 : i32
    return %c0_i32, %c0_i32_0 : i32, i32
  }
  func.func @transform_8(%arg0: i32) -> (i32, i32) {
    %c0_i32 = arith.constant 0 : i32
    %c0_i32_0 = arith.constant 0 : i32
    %c0_i32_1 = arith.constant 0 : i32
    return %c0_i32, %c0_i32_0 : i32, i32
  }
  func.func @transform_9(%arg0: i32) -> (i32, i32) {
    %c0_i32 = arith.constant 0 : i32
    %c0_i32_0 = arith.constant 0 : i32
    %c0_i32_1 = arith.constant 0 : i32
    return %c0_i32, %c0_i32_0 : i32, i32
  }
  func.func @transform_10(%arg0: i32) -> (i32, i32) {
    %c0_i32 = arith.constant 0 : i32
    %c0_i32_0 = arith.constant 0 : i32
    %c0_i32_1 = arith.constant 0 : i32
    return %c0_i32, %c0_i32_0 : i32, i32
  }
  func.func @transform_11(%arg0: i32) -> (i32, i32, i32) {
    %c0_i32 = arith.constant 0 : i32
    %c0_i32_0 = arith.constant 0 : i32
    %c0_i32_1 = arith.constant 0 : i32
    return %arg0, %c0_i32, %c0_i32_0 : i32, i32, i32
  }
}

</mosaic_0001>

<llo_original>
// kernel: tpu_custom_call.1
$region0: #{tpu_custom_call.1}
  #allocation0 [shape = 'u32[]', space=smem, size = 0x4, offset = 0x4, fixed_abs, tag = 'smem constant byte address 0x4 - core index']
  #allocation1 [shape = 'u32[72,128]{1,0:T(1,128)}', space=vmem, size = 0x9000, scoped, tag = 'internal scratch']
  #allocation2 [shape = 'f32[1,1]{1,0:T(1,128)S(1)}', space=vmem, size = 0x200, scoped, tag = 'scoped memory for tpu_custom_call.1']
  %s0 = inlined_call_operand.vmem [shape: f32[8,38], index: 0, kind: input, shape index: {}]
  %s1 = inlined_call_operand.hbm [shape: f32[8,64], index: 1, kind: input, shape index: {}]
  %s2 = inlined_call_operand.vmem [shape: f32[64,20], index: 2, kind: input, shape index: {}]
  %s3 = inlined_call_operand.vmem [shape: f32[1,20], index: 3, kind: input, shape index: {}]
  %s4 = inlined_call_operand.vmem [shape: f32[38,256], index: 4, kind: input, shape index: {}]
  %s5 = inlined_call_operand.hbm [shape: f32[20,256], index: 5, kind: input, shape index: {}]
  %s6 = inlined_call_operand.vmem [shape: f32[1,256], index: 6, kind: input, shape index: {}]
  %s7 = inlined_call_operand.hbm [shape: f32[256,128], index: 7, kind: input, shape index: {}]
  %s8 = inlined_call_operand.vmem [shape: f32[1,128], index: 8, kind: input, shape index: {}]
  %s9 = inlined_call_operand.vmem [shape: f32[1,128], index: 9, kind: input, shape index: {}]
  %s10 = inlined_call_operand.<no memory space> [shape: f32[1,1], index: 10, kind: input, shape index: {}]
  %s11 = inlined_call_operand.hbm [shape: f32[1,1,8], index: 11, kind: output, shape index: {}]
  %s12 = sld [smem:[#allocation0]]
  $region66: #{tpu_custom_call.1} parent=0
    _
  %s14 = ssub.s32 1, %s12
  %s15 = scalar_select 0, %s14, %s12
  %v16 = vstv %s10
  %17 = vst [vmem:[#allocation2] sm:$0x1] %v16
  $region1: #{tpu_custom_call.1} parent=0
    #allocation3 [shape = 'u8[4096]{0}', space=vmem, size = 0x1000, scoped, tag = 'input window, operand 1, single buffered']
    #allocation4 [shape = 's32[1]{0}', space=sflag, size = 0x4, scoped, tag = 'scoped memory for tpu_custom_call.1']
    #allocation5 [shape = 's32[1]{0}', space=sflag, size = 0x4, scoped, tag = 'scoped memory for tpu_custom_call.1']
    #allocation6 [shape = 'u8[24576]{0}', space=vmem, size = 0x6000, scoped, tag = 'input window, operand 5, single buffered']
    #allocation7 [shape = 's32[1]{0}', space=sflag, size = 0x4, scoped, tag = 'scoped memory for tpu_custom_call.1']
    #allocation8 [shape = 'u8[131072]{0}', space=vmem, size = 0x20000, scoped, tag = 'input window, operand 7, single buffered']
    #allocation9 [shape = 'u8[512]{0}', space=vmem, size = 0x400, scoped, tag = 'output window, operand 0, single buffered']
    %18 = vsyncpa [#allocation4], 0
    %19 = vsyncpa [#allocation7], 0
    %20 = vsyncpa [#allocation5], 0
    // Predicated region
    $region2: #{tpu_custom_call.1} parent=1 // pred_check
      _
    $region3: #{tpu_custom_call.1} parent=1 // pred_check_branch
      %22 = sbr.rel (0) target = $region5
    $region4: #{tpu_custom_call.1} parent=1 // pred_region
      _
    $region5: #{tpu_custom_call.1} parent=1 // pred_fallthru
      _
    // Predicated region
    $region6: #{tpu_custom_call.1} parent=1 // pred_check
      _
    $region7: #{tpu_custom_call.1} parent=1 // pred_check_branch
      %24 = sbr.rel (0) target = $region9
    $region8: #{tpu_custom_call.1} parent=1 // pred_region
      %26 = vsyncadd [#allocation4], 0
      %s28 = sshll.u32 %s1, 4
      %s29 = int_to_ptr.hbm [resolvable:$true] %s28
      %s30 = sshll.u32 [#allocation3], 4
      %s31 = int_to_ptr.vmem [resolvable:$true] %s30
      %33 = dma.hbm_to_vmem [thread:$0]  %s29, 128, %s31, [#allocation4]
    $region9: #{tpu_custom_call.1} parent=1 // pred_fallthru
      _
    // Predicated region
    $region10: #{tpu_custom_call.1} parent=1 // pred_check
      _
    $region11: #{tpu_custom_call.1} parent=1 // pred_check_branch
      %35 = sbr.rel (0) target = $region13
    $region12: #{tpu_custom_call.1} parent=1 // pred_region
      _
    $region13: #{tpu_custom_call.1} parent=1 // pred_fallthru
      _
    // Predicated region
    $region14: #{tpu_custom_call.1} parent=1 // pred_check
      _
    $region15: #{tpu_custom_call.1} parent=1 // pred_check_branch
      %37 = sbr.rel (0) target = $region17
    $region16: #{tpu_custom_call.1} parent=1 // pred_region
      _
    $region17: #{tpu_custom_call.1} parent=1 // pred_fallthru
      _
    // Predicated region
    $region18: #{tpu_custom_call.1} parent=1 // pred_check
      _
    $region19: #{tpu_custom_call.1} parent=1 // pred_check_branch
      %39 = sbr.rel (0) target = $region21
    $region20: #{tpu_custom_call.1} parent=1 // pred_region
      _
    $region21: #{tpu_custom_call.1} parent=1 // pred_fallthru
      _
    // Predicated region
    $region22: #{tpu_custom_call.1} parent=1 // pred_check
      _
    $region23: #{tpu_custom_call.1} parent=1 // pred_check_branch
      %41 = sbr.rel (0) target = $region25
    $region24: #{tpu_custom_call.1} parent=1 // pred_region
      %43 = vsyncadd [#allocation7], 0
      %s44 = sshll.u32 %s5, 4
      %s45 = int_to_ptr.hbm [resolvable:$true] %s44
      %s46 = sshll.u32 [#allocation6], 4
      %s47 = int_to_ptr.vmem [resolvable:$true] %s46
      %52 = dma.hbm_to_vmem [thread:$0]  %s45, 768, %s47, [#allocation7], 256, 256, 16
    $region25: #{tpu_custom_call.1} parent=1 // pred_fallthru
      _
    // Predicated region
    $region26: #{tpu_custom_call.1} parent=1 // pred_check
      _
    $region27: #{tpu_custom_call.1} parent=1 // pred_check_branch
      %54 = sbr.rel (0) target = $region29
    $region28: #{tpu_custom_call.1} parent=1 // pred_region
      _
    $region29: #{tpu_custom_call.1} parent=1 // pred_fallthru
      _
    // Predicated region
    $region30: #{tpu_custom_call.1} parent=1 // pred_check
      _
    $region31: #{tpu_custom_call.1} parent=1 // pred_check_branch
      %56 = sbr.rel (0) target = $region33
    $region32: #{tpu_custom_call.1} parent=1 // pred_region
      %58 = vsyncadd [#allocation7], 0
      %s59 = sshll.u32 %s7, 4
      %s60 = int_to_ptr.hbm [resolvable:$true] %s59
      %s61 = sshll.u32 [#allocation8], 4
      %s62 = int_to_ptr.vmem [resolvable:$true] %s61
      %67 = dma.hbm_to_vmem [thread:$0]  %s60, 4096, %s62, [#allocation7], 128, 128, 8
    $region33: #{tpu_custom_call.1} parent=1 // pred_fallthru
      _
    // Predicated region
    $region34: #{tpu_custom_call.1} parent=1 // pred_check
      _
    $region35: #{tpu_custom_call.1} parent=1 // pred_check_branch
      %69 = sbr.rel (0) target = $region37
    $region36: #{tpu_custom_call.1} parent=1 // pred_region
      _
    $region37: #{tpu_custom_call.1} parent=1 // pred_fallthru
      _
    // Predicated region
    $region38: #{tpu_custom_call.1} parent=1 // pred_check
      _
    $region39: #{tpu_custom_call.1} parent=1 // pred_check_branch
      %71 = sbr.rel (0) target = $region41
    $region40: #{tpu_custom_call.1} parent=1 // pred_region
      _
    $region41: #{tpu_custom_call.1} parent=1 // pred_fallthru
      _
    // Predicated region
    $region42: #{tpu_custom_call.1} parent=1 // pred_check
      _
    $region43: #{tpu_custom_call.1} parent=1 // pred_check_branch
      %73 = sbr.rel (0) target = $region45
    $region44: #{tpu_custom_call.1} parent=1 // pred_region
      _
    $region45: #{tpu_custom_call.1} parent=1 // pred_fallthru
      _
    // Predicated region
    $region46: #{tpu_custom_call.1} parent=1 // pred_check
      _
    $region47: #{tpu_custom_call.1} parent=1 // pred_check_branch
      %75 = sbr.rel (0) target = $region49
    $region48: #{tpu_custom_call.1} parent=1 // pred_region
      %77 = dma.done [#allocation4], 128
    $region49: #{tpu_custom_call.1} parent=1 // pred_fallthru
      _
    // Predicated region
    $region50: #{tpu_custom_call.1} parent=1 // pred_check
      _
    $region51: #{tpu_custom_call.1} parent=1 // pred_check_branch
      %79 = sbr.rel (0) target = $region53
    $region52: #{tpu_custom_call.1} parent=1 // pred_region
      %81 = dma.done [#allocation7], 768
    $region53: #{tpu_custom_call.1} parent=1 // pred_fallthru
      _
    // Predicated region
    $region54: #{tpu_custom_call.1} parent=1 // pred_check
      _
    $region55: #{tpu_custom_call.1} parent=1 // pred_check_branch
      %83 = sbr.rel (0) target = $region57
    $region56: #{tpu_custom_call.1} parent=1 // pred_region
      %85 = dma.done [#allocation7], 4096
    $region57: #{tpu_custom_call.1} parent=1 // pred_fallthru
      _
    %v86 = vld [vmem:[#allocation3] sm:$0xff]
    %v87 = vld [vmem:[%s2] sm:$0xff]
    %v88 = vld [vmem:[%s2 + $0x8] sm:$0xff]
    %v89 = vld [vmem:[%s2 + $0x10] sm:$0xff]
    %v90 = vld [vmem:[%s2 + $0x18] sm:$0xff]
    %v91 = vld [vmem:[%s2 + $0x20] sm:$0xff]
    %v92 = vld [vmem:[%s2 + $0x28] sm:$0xff]
    %v93 = vld [vmem:[%s2 + $0x30] sm:$0xff]
    %v94 = vld [vmem:[%s2 + $0x38] sm:$0xff]
    %v95 = vld [vmem:[%s3] sm:$0x1]
    %v97 = vperm.slane %v95, 0
    %vm99 = vcmask 523264
    %v101 = vsel %vm99, %v86, 0
    %103 = vmatpush.msra.mxu0 0.0
    %104 = vmatpush.msra.mxu0 0.0
    %105 = vmatpush.msra.mxu0 0.0
    %106 = vmatpush.msra.mxu0 0.0
    %107 = vmatpush.msra.mxu0 0.0
    %108 = vmatpush.msra.mxu0 0.0
    %109 = vmatpush.msra.mxu0 0.0
    %110 = vmatpush.msra.mxu0 0.0
    %111 = vmatpush.msra.mxu0 %v94
    %112 = vmatpush.msra.mxu0 %v93
    %113 = vmatpush.msra.mxu0 %v92
    %114 = vmatpush.msra.mxu0 %v91
    %115 = vmatpush.msra.mxu0 %v90
    %116 = vmatpush.msra.mxu0 %v89
    %117 = vmatpush.msra.mxu0 %v88
    %118 = vmatpush.msra.mxu0 %v87
    %119 = vmatmul.f32.gmra.mxu0 %v101
    %v120 = vpop.f32.mrf.mxu0
    %v121 = vadd.f32 %v97, %v120
    %122 = vdwg.mxu0
    %v123 = vmax.f32 %v121, 0.0
    %v124 = vld [vmem:[%s0] sm:$0xff]
    %v125 = vld [vmem:[%s4] sm:$0xff]
    %v126 = vld [vmem:[%s4 + $0x8] sm:$0xff]
    %v127 = vld [vmem:[%s4 + $0x10] sm:$0xff]
    %v128 = vld [vmem:[%s4 + $0x18] sm:$0xff]
    %v129 = vld [vmem:[%s4 + $0x20] sm:$0xff]
    %v130 = vld [vmem:[%s4 + $0x28] sm:$0xff]
    %v131 = vld [vmem:[%s4 + $0x30] sm:$0xff]
    %v132 = vld [vmem:[%s4 + $0x38] sm:$0xff]
    %v133 = vld [vmem:[%s4 + $0x40] sm:$0x3f]
    %v134 = vld [vmem:[%s4 + $0x48] sm:$0x3f]
    %v135 = vld [vmem:[#allocation6] sm:$0xff]
    %v136 = vld [vmem:[#allocation6 + $0x8] sm:$0xff]
    %v137 = vld [vmem:[#allocation6 + $0x10] sm:$0xff]
    %v138 = vld [vmem:[#allocation6 + $0x18] sm:$0xff]
    %v139 = vld [vmem:[#allocation6 + $0x20] sm:$0xf]
    %v140 = vld [vmem:[#allocation6 + $0x28] sm:$0xf]
    %vm141 = vcmask 162816
    %v143 = vsel %vm141, %v123, 0
    %vm145 = vcmask 1043456
    %v147 = vsel %vm145, %v139, 0
    %v150 = vsel %vm145, %v140, 0
    %152 = vmatpush.msra.mxu0 0.0
    %153 = vmatpush.msra.mxu0 0.0
    %154 = vmatpush.msra.mxu0 0.0
    %155 = vmatpush.msra.mxu0 0.0
    %156 = vmatpush.msra.mxu0 0.0
    %157 = vmatpush.msra.mxu0 0.0
    %158 = vmatpush.msra.mxu0 0.0
    %159 = vmatpush.msra.mxu0 0.0
    %160 = vmatpush.msra.mxu0 0.0
    %161 = vmatpush.msra.mxu0 0.0
    %162 = vmatpush.msra.mxu0 0.0
    %163 = vmatpush.msra.mxu0 0.0
    %164 = vmatpush.msra.mxu0 0.0
    %165 = vmatpush.msra.mxu0 %v147
    %166 = vmatpush.msra.mxu0 %v137
    %167 = vmatpush.msra.mxu0 %v135
    %168 = vmatmul.f32.gmra.mxu0 %v143
    %v169 = vpop.f32.mrf.mxu0
    %v170 = vadd.f32 0.0, %v169
    %171 = vdwg.mxu0
    %172 = vmatpush.msra.mxu0 0.0
    %173 = vmatpush.msra.mxu0 0.0
    %174 = vmatpush.msra.mxu0 0.0
    %175 = vmatpush.msra.mxu0 0.0
    %176 = vmatpush.msra.mxu0 0.0
    %177 = vmatpush.msra.mxu0 0.0
    %178 = vmatpush.msra.mxu0 0.0
    %179 = vmatpush.msra.mxu0 0.0
    %180 = vmatpush.msra.mxu0 0.0
    %181 = vmatpush.msra.mxu0 0.0
    %182 = vmatpush.msra.mxu0 0.0
    %183 = vmatpush.msra.mxu0 0.0
    %184 = vmatpush.msra.mxu0 0.0
    %185 = vmatpush.msra.mxu0 %v150
    %186 = vmatpush.msra.mxu0 %v138
    %187 = vmatpush.msra.mxu0 %v136
    %188 = vmatmul.f32.gmra.mxu0 %v143
    %v189 = vpop.f32.mrf.mxu0
    %v190 = vadd.f32 0.0, %v189
    %191 = vdwg.mxu0
    %vm192 = vcmask 310272
    %v194 = vsel %vm192, %v124, 0
    %vm196 = vcmask 1045504
    %v198 = vsel %vm196, %v133, 0
    %v201 = vsel %vm196, %v134, 0
    %203 = vmatpush.msra.mxu0 0.0
    %204 = vmatpush.msra.mxu0 0.0
    %205 = vmatpush.msra.mxu0 0.0
    %206 = vmatpush.msra.mxu0 0.0
    %207 = vmatpush.msra.mxu0 0.0
    %208 = vmatpush.msra.mxu0 0.0
    %209 = vmatpush.msra.mxu0 0.0
    %210 = vmatpush.msra.mxu0 0.0
    %211 = vmatpush.msra.mxu0 0.0
    %212 = vmatpush.msra.mxu0 0.0
    %213 = vmatpush.msra.mxu0 0.0
    %214 = vmatpush.msra.mxu0 %v198
    %215 = vmatpush.msra.mxu0 %v131
    %216 = vmatpush.msra.mxu0 %v129
    %217 = vmatpush.msra.mxu0 %v127
    %218 = vmatpush.msra.mxu0 %v125
    %219 = vmatmul.f32.gmra.mxu0 %v194
    %v220 = vpop.f32.mrf.mxu0
    %v221 = vadd.f32 %v170, %v220
    %222 = vdwg.mxu0
    %223 = vmatpush.msra.mxu0 0.0
    %224 = vmatpush.msra.mxu0 0.0
    %225 = vmatpush.msra.mxu0 0.0
    %226 = vmatpush.msra.mxu0 0.0
    %227 = vmatpush.msra.mxu0 0.0
    %228 = vmatpush.msra.mxu0 0.0
    %229 = vmatpush.msra.mxu0 0.0
    %230 = vmatpush.msra.mxu0 0.0
    %231 = vmatpush.msra.mxu0 0.0
    %232 = vmatpush.msra.mxu0 0.0
    %233 = vmatpush.msra.mxu0 0.0
    %234 = vmatpush.msra.mxu0 %v201
    %235 = vmatpush.msra.mxu0 %v132
    %236 = vmatpush.msra.mxu0 %v130
    %237 = vmatpush.msra.mxu0 %v128
    %238 = vmatpush.msra.mxu0 %v126
    %239 = vmatmul.f32.gmra.mxu0 %v194
    %v240 = vpop.f32.mrf.mxu0
    %v241 = vadd.f32 %v190, %v240
    %242 = vdwg.mxu0
    %v243 = vld [vmem:[%s6] sm:$0x3]
    %v245 = vperm.slane %v243, 0
    %v246 = vperm.slane %v243, 1
    %v249 = vadd.f32 %v221, %v245
    %v250 = vadd.f32 %v241, %v246
    %v251 = vmax.f32 %v249, 0.0
    %v252 = vmax.f32 %v250, 0.0
    %v253 = vld [vmem:[#allocation8] sm:$0xff]
    %v254 = vld [vmem:[#allocation8 + $0x8] sm:$0xff]
    %v255 = vld [vmem:[#allocation8 + $0x10] sm:$0xff]
    %v256 = vld [vmem:[#allocation8 + $0x18] sm:$0xff]
    %v257 = vld [vmem:[#allocation8 + $0x20] sm:$0xff]
    %v258 = vld [vmem:[#allocation8 + $0x28] sm:$0xff]
    %v259 = vld [vmem:[#allocation8 + $0x30] sm:$0xff]
    %v260 = vld [vmem:[#allocation8 + $0x38] sm:$0xff]
    %v261 = vld [vmem:[#allocation8 + $0x40] sm:$0xff]
    %v262 = vld [vmem:[#allocation8 + $0x48] sm:$0xff]
    %v263 = vld [vmem:[#allocation8 + $0x50] sm:$0xff]
    %v264 = vld [vmem:[#allocation8 + $0x58] sm:$0xff]
    %v265 = vld [vmem:[#allocation8 + $0x60] sm:$0xff]
    %v266 = vld [vmem:[#allocation8 + $0x68] sm:$0xff]
    %v267 = vld [vmem:[#allocation8 + $0x70] sm:$0xff]
    %v268 = vld [vmem:[#allocation8 + $0x78] sm:$0xff]
    %v269 = vld [vmem:[#allocation8 + $0x80] sm:$0xff]
    %v270 = vld [vmem:[#allocation8 + $0x88] sm:$0xff]
    %v271 = vld [vmem:[#allocation8 + $0x90] sm:$0xff]
    %v272 = vld [vmem:[#allocation8 + $0x98] sm:$0xff]
    %v273 = vld [vmem:[#allocation8 + $0xa0] sm:$0xff]
    %v274 = vld [vmem:[#allocation8 + $0xa8] sm:$0xff]
    %v275 = vld [vmem:[#allocation8 + $0xb0] sm:$0xff]
    %v276 = vld [vmem:[#allocation8 + $0xb8] sm:$0xff]
    %v277 = vld [vmem:[#allocation8 + $0xc0] sm:$0xff]
    %v278 = vld [vmem:[#allocation8 + $0xc8] sm:$0xff]
    %v279 = vld [vmem:[#allocation8 + $0xd0] sm:$0xff]
    %v280 = vld [vmem:[#allocation8 + $0xd8] sm:$0xff]
    %v281 = vld [vmem:[#allocation8 + $0xe0] sm:$0xff]
    %v282 = vld [vmem:[#allocation8 + $0xe8] sm:$0xff]
    %v283 = vld [vmem:[#allocation8 + $0xf0] sm:$0xff]
    %v284 = vld [vmem:[#allocation8 + $0xf8] sm:$0xff]
    %v285 = vld [vmem:[%s8] sm:$0x1]
    %v287 = vperm.slane %v285, 0
    %289 = vmatpush.msra.mxu0 %v268
    %290 = vmatpush.msra.mxu0 %v267
    %291 = vmatpush.msra.mxu0 %v266
    %292 = vmatpush.msra.mxu0 %v265
    %293 = vmatpush.msra.mxu0 %v264
    %294 = vmatpush.msra.mxu0 %v263
    %295 = vmatpush.msra.mxu0 %v262
    %296 = vmatpush.msra.mxu0 %v261
    %297 = vmatpush.msra.mxu0 %v260
    %298 = vmatpush.msra.mxu0 %v259
    %299 = vmatpush.msra.mxu0 %v258
    %300 = vmatpush.msra.mxu0 %v257
    %301 = vmatpush.msra.mxu0 %v256
    %302 = vmatpush.msra.mxu0 %v255
    %303 = vmatpush.msra.mxu0 %v254
    %304 = vmatpush.msra.mxu0 %v253
    %305 = vmatmul.f32.gmra.mxu0 %v251
    %v306 = vpop.f32.mrf.mxu0
    %v307 = vadd.f32 %v287, %v306
    %308 = vdwg.mxu0
    %309 = vmatpush.msra.mxu0 %v284
    %310 = vmatpush.msra.mxu0 %v283
    %311 = vmatpush.msra.mxu0 %v282
    %312 = vmatpush.msra.mxu0 %v281
    %313 = vmatpush.msra.mxu0 %v280
    %314 = vmatpush.msra.mxu0 %v279
    %315 = vmatpush.msra.mxu0 %v278
    %316 = vmatpush.msra.mxu0 %v277
    %317 = vmatpush.msra.mxu0 %v276
    %318 = vmatpush.msra.mxu0 %v275
    %319 = vmatpush.msra.mxu0 %v274
    %320 = vmatpush.msra.mxu0 %v273
    %321 = vmatpush.msra.mxu0 %v272
    %322 = vmatpush.msra.mxu0 %v271
    %323 = vmatpush.msra.mxu0 %v270
    %324 = vmatpush.msra.mxu0 %v269
    %325 = vmatmul.f32.gmra.mxu0 %v252
    %v326 = vpop.f32.mrf.mxu0
    %v327 = vadd.f32 %v307, %v326
    %328 = vdwg.mxu0
    %v329 = vmax.f32 %v327, 0.0
    %v330 = vld [vmem:[%s9] sm:$0x1]
    %v331 = vld [vmem:[#allocation2] sm:$0x1]
    %333 = vset.pattern.permute.xlu0 0
    %334 = vperm.xlu0 %333, %v331
    %v335 = vpop.permute.xlu0 %334
    %v337 = vperm.slane %v335, 0
    %338 = vmatpush.xpose.msra.mxu0 0.0
    %339 = vmatpush.xpose.msra.mxu0 0.0
    %340 = vmatpush.xpose.msra.mxu0 0.0
    %341 = vmatpush.xpose.msra.mxu0 0.0
    %342 = vmatpush.xpose.msra.mxu0 0.0
    %343 = vmatpush.xpose.msra.mxu0 0.0
    %344 = vmatpush.xpose.msra.mxu0 0.0
    %345 = vmatpush.xpose.msra.mxu0 0.0
    %346 = vmatpush.xpose.msra.mxu0 0.0
    %347 = vmatpush.xpose.msra.mxu0 0.0
    %348 = vmatpush.xpose.msra.mxu0 0.0
    %349 = vmatpush.xpose.msra.mxu0 0.0
    %350 = vmatpush.xpose.msra.mxu0 0.0
    %351 = vmatpush.xpose.msra.mxu0 0.0
    %352 = vmatpush.xpose.msra.mxu0 0.0
    %353 = vmatpush.xpose.msra.mxu0 %v329
    %354 = vmatmul.f32.gmra.mxu0 %v330
    %v355 = vpop.f32.mrf.mxu0
    %v356 = vadd.f32 %v337, %v355
    %357 = vdwg.mxu0
    %vm358 = vcmask 57344
    %359 = vst.msk [vmem:[#allocation9] sm:$0x1] %vm358, %v356
    // Predicated region
    $region58: #{tpu_custom_call.1} parent=1 // pred_check
      _
    $region59: #{tpu_custom_call.1} parent=1 // pred_check_branch
      %361 = sbr.rel (0) target = $region61
    $region60: #{tpu_custom_call.1} parent=1 // pred_region
      %363 = vsyncadd [#allocation5], 0
      %s365 = sshll.u32 [#allocation9], 4
      %s366 = int_to_ptr.vmem [resolvable:$true] %s365
      %s367 = sshll.u32 %s11, 4
      %s368 = int_to_ptr.hbm [resolvable:$true] %s367
      %370 = dma.vmem_to_hbm [thread:$0]  %s366, 16, %s368, [#allocation5]
    $region61: #{tpu_custom_call.1} parent=1 // pred_fallthru
      _
    // Predicated region
    $region62: #{tpu_custom_call.1} parent=1 // pred_check
      _
    $region63: #{tpu_custom_call.1} parent=1 // pred_check_branch
      %372 = sbr.rel (0) target = $region65
    $region64: #{tpu_custom_call.1} parent=1 // pred_region
      %374 = dma.done [#allocation5], 16
    $region65: #{tpu_custom_call.1} parent=1 // pred_fallthru
      _
    %375 = vsyncpa [#allocation4], 1
    %376 = vsyncpa [#allocation7], 1
    %377 = vsyncpa [#allocation5], 1

</llo_original>
